<compile_context>
chip_gen: v7x
topology: tpu7x:2x2x1
jax: 0.10.0
libtpu: 0.0.40
codegen_flags: <defaults>
</compile_context>

<pallas_src>
import math

import jax
import jax.numpy as jnp
from jax.experimental import pallas as pl
from jax.experimental.pallas import tpu as pltpu

_LANE = 128
_SUBLANE = 8
_SMALL_BYTES = 1 << 20          # below ~1 MiB a pallas_call is pure launch overhead
_TARGET_BLOCK_BYTES = 4 << 20   # ~4 MiB input blocks: near HBM roofline, v7x-VMEM safe


def _affine_kernel(x_ref, scale_ref, mean_ref, o_ref):
    # out = x * exp(0.5*logvar) + mean ; scale/mean are (1, P) and broadcast
    # across the batch tile on the VPU.
    o_ref[...] = x_ref[...] * scale_ref[...] + mean_ref[...]


def _fold_factor(n, p):
    """Smallest f such that (f * p) % 128 == 0 and n % f == 0 (else 1)."""
    if p % _LANE == 0:
        return 1
    f = _LANE // math.gcd(p, _LANE)
    return f if (n % f == 0) else 1


def _choose_tile_rows(rows, row_bytes, target_bytes):
    """Largest multiple-of-8 divisor of `rows` that stays under the byte target
    and (when possible) leaves >= 2 grid steps for v7x megacore sharding."""
    if rows % _SUBLANE != 0:
        return rows  # full-array block (legal: block dims == array dims)
    target = max(_SUBLANE, int(target_bytes // max(row_bytes, 1)))
    target = (target // _SUBLANE) * _SUBLANE
    cap = rows // 2 if rows >= 2 * _SUBLANE else rows
    cap = max(_SUBLANE, (cap // _SUBLANE) * _SUBLANE)
    limit = min(target, cap, rows)
    for t in range(limit, _SUBLANE - 1, -_SUBLANE):
        if rows % t == 0:
            return t
    return rows


def gaussian_alternative_forward(inputs, mean, logvar, *,
                                 target_block_bytes=_TARGET_BLOCK_BYTES,
                                 force_pallas=False,
                                 donate_input=False):
    """inputs: (n, p); mean, logvar: (p,). Returns (n, p)."""
    n, p = inputs.shape
    dtype = inputs.dtype
    itemsize = jnp.dtype(dtype).itemsize

    # Hoisted once in the wrapper instead of re-evaluating exp per grid step.
    scale = jnp.exp(0.5 * logvar).astype(dtype)
    mean = mean.astype(dtype)

    # Tiny inputs: XLA's fused elementwise beats a custom-call dispatch.
    if not force_pallas and n * p * itemsize < _SMALL_BYTES:
        return inputs * scale[None, :] + mean[None, :]

    # Lane-dense fold: (n, p) -> (n/f, f*p) with f*p a multiple of 128.
    f = _fold_factor(n, p)
    p_eff = f * p
    rows = n // f
    x2 = inputs.reshape(rows, p_eff)
    scale2 = jnp.tile(scale, f).reshape(1, p_eff)
    mean2 = jnp.tile(mean, f).reshape(1, p_eff)

    row_bytes = p_eff * itemsize
    tile_rows = _choose_tile_rows(rows, row_bytes, target_block_bytes)
    grid = (rows // tile_rows,)

    out2 = pl.pallas_call(
        _affine_kernel,
        out_shape=jax.ShapeDtypeStruct((rows, p_eff), dtype),
        grid_spec=pltpu.PrefetchScalarGridSpec(
            num_scalar_prefetch=0,
            grid=grid,
            in_specs=[
                pl.BlockSpec((tile_rows, p_eff), lambda i: (i, 0)),  # x tile
                pl.BlockSpec((1, p_eff), lambda i: (0, 0)),          # scale (VMEM-resident)
                pl.BlockSpec((1, p_eff), lambda i: (0, 0)),          # mean  (VMEM-resident)
            ],
            out_specs=pl.BlockSpec((tile_rows, p_eff), lambda i: (i, 0)),
        ),
        compiler_params=pltpu.CompilerParams(
            dimension_semantics=("parallel",),   # batch axis shards across TCs (v7x)
        ),
        input_output_aliases={0: 0} if donate_input else {},
    )(x2, scale2, mean2)

    return out2.reshape(n, p)


# TODO(synk): GaussianAlternative.sample() (torch.rand noise + qlogq) is not
# translated; only forward() is implemented as a kernel.


if __name__ == "__main__":
    key = jax.random.PRNGKey(0)
    k_in, k_mean, k_logvar = jax.random.split(key, 3)

    # (batch, p) consistent with the module; folds lane-dense to (128, 128)
    # with a 2-step parallel grid.
    n, p = 512, 32

    # Deterministic "parameters": torch.rand(p) -> Uniform[0, 1)
    mean = jax.random.uniform(k_mean, (p,), dtype=jnp.float32)
    logvar = jax.random.uniform(k_logvar, (p,), dtype=jnp.float32)

    inputs = jax.random.normal(k_in, (n, p), dtype=jnp.float32)

    out = gaussian_alternative_forward(inputs, mean, logvar, force_pallas=True)
    out = jax.block_until_ready(out)

    # Reference check in plain JAX.
    ref = inputs * jnp.exp(0.5 * logvar)[None, :] + mean[None, :]
    assert out.shape == (n, p)
    assert jnp.allclose(out, ref, atol=1e-6, rtol=1e-6)

    print("KERNEL_OK")
</pallas_src>

<mosaic_0001>
module attributes {stable_mosaic.version = 11 : i64} {
  func.func @_affine_kernel(%arg0: i32, %arg1: memref<64x128xf32, #tpu.memory_space<vmem>>, %arg2: memref<1x128xf32, #tpu.memory_space<vmem>>, %arg3: memref<1x128xf32, #tpu.memory_space<vmem>>, %arg4: memref<64x128xf32, #tpu.memory_space<vmem>>) attributes {dimension_semantics = [#tpu.dimension_semantics<parallel>], iteration_bounds = array<i64: 2>, scalar_prefetch = 0 : i64, scratch_operands = 0 : i64, tpu.core_type = #tpu.core_type<tc>, window_params = [{transform_indices = @transform_0, window_bounds = array<i64: 64, 128>}, {pipeline_mode = #tpu.pipeline_mode<synchronous>, transform_indices = @transform_1, window_bounds = array<i64: 1, 128>}, {pipeline_mode = #tpu.pipeline_mode<synchronous>, transform_indices = @transform_2, window_bounds = array<i64: 1, 128>}, {transform_indices = @transform_3, window_bounds = array<i64: 64, 128>}]} {
    %c0 = arith.constant 0 : index
    %c0_0 = arith.constant 0 : index
    %0 = vector.load %arg1[%c0, %c0_0] : memref<64x128xf32, #tpu.memory_space<vmem>>, vector<64x128xf32>
    %c0_1 = arith.constant 0 : index
    %c0_2 = arith.constant 0 : index
    %1 = vector.load %arg2[%c0_1, %c0_2] : memref<1x128xf32, #tpu.memory_space<vmem>>, vector<1x128xf32>
    %2 = vector.broadcast %1 : vector<1x128xf32> to vector<64x128xf32>
    %3 = arith.mulf %0, %2 : vector<64x128xf32>
    %c0_3 = arith.constant 0 : index
    %c0_4 = arith.constant 0 : index
    %4 = vector.load %arg3[%c0_3, %c0_4] : memref<1x128xf32, #tpu.memory_space<vmem>>, vector<1x128xf32>
    %5 = vector.broadcast %4 : vector<1x128xf32> to vector<64x128xf32>
    %6 = arith.addf %3, %5 : vector<64x128xf32>
    %c0_5 = arith.constant 0 : index
    %c0_6 = arith.constant 0 : index
    %7 = vector.load %arg4[%c0_5, %c0_6] : memref<64x128xf32, #tpu.memory_space<vmem>>, vector<64x128xf32>
    tpu.vector_store %arg4[%c0_5, %c0_6], %6 {strides = array<i32>} : memref<64x128xf32, #tpu.memory_space<vmem>>, vector<64x128xf32>,
    return
  }
  func.func @transform_0(%arg0: i32) -> (i32, i32) {
    %c0_i32 = arith.constant 0 : i32
    %c0_i32_0 = arith.constant 0 : i32
    return %arg0, %c0_i32 : i32, i32
  }
  func.func @transform_1(%arg0: i32) -> (i32, i32) {
    %c0_i32 = arith.constant 0 : i32
    %c0_i32_0 = arith.constant 0 : i32
    %c0_i32_1 = arith.constant 0 : i32
    return %c0_i32, %c0_i32_0 : i32, i32
  }
  func.func @transform_2(%arg0: i32) -> (i32, i32) {
    %c0_i32 = arith.constant 0 : i32
    %c0_i32_0 = arith.constant 0 : i32
    %c0_i32_1 = arith.constant 0 : i32
    return %c0_i32, %c0_i32_0 : i32, i32
  }
  func.func @transform_3(%arg0: i32) -> (i32, i32) {
    %c0_i32 = arith.constant 0 : i32
    %c0_i32_0 = arith.constant 0 : i32
    return %arg0, %c0_i32 : i32, i32
  }
}

</mosaic_0001>

<llo_original>
// kernel: tpu_custom_call.1
$region0: #{tpu_custom_call.1}
  #allocation0 [shape = 'u32[]', space=smem, size = 0x4, offset = 0x4, fixed_abs, tag = 'smem constant byte address 0x4 - core index']
  #allocation1 [shape = 'u32[144,128]{1,0:T(1,128)}', space=vmem, size = 0x12000, scoped, tag = 'internal scratch']
  %s0 = inlined_call_operand.hbm [shape: f32[128,128], index: 0, kind: input, shape index: {}]
  %s1 = inlined_call_operand.vmem [shape: f32[1,128], index: 1, kind: input, shape index: {}]
  %s2 = inlined_call_operand.vmem [shape: f32[1,128], index: 2, kind: input, shape index: {}]
  %s3 = inlined_call_operand.hbm [shape: f32[128,128], index: 3, kind: output, shape index: {}]
  %s4 = sld [smem:[#allocation0]]
  $region49: #{tpu_custom_call.1} parent=0
    _
  %s6 = ssub.s32 1, %s4
  %s7 = scalar_select 0, %s6, %s4
  $region1: #{tpu_custom_call.1} parent=0
    #allocation2 [shape = 'u8[65536]{0}', space=vmem, size = 0x10000, scoped, tag = 'input window, operand 0']
    #allocation3 [shape = 's32[2]{0}', space=sflag, size = 0x8, scoped, tag = 'scoped memory for tpu_custom_call.1']
    #allocation4 [shape = 's32[2]{0}', space=sflag, size = 0x8, scoped, tag = 'scoped memory for tpu_custom_call.1']
    #allocation5 [shape = 'u8[65536]{0}', space=vmem, size = 0x10000, scoped, tag = 'output window, operand 0']
    %8 = vsyncpa [#allocation3], 0
    %s9 = scalar_lea.sflag [#allocation3], 1
    %10 = vsyncpa %s9, 0
    %11 = vsyncpa [#allocation4], 0
    %s12 = scalar_lea.sflag [#allocation4], 1
    %13 = vsyncpa %s12, 0
    loop: start=0, step=1, limit=4
    $region2: #{tpu_custom_call.1} parent=1 // loop_pre_header
      _
    $region3: #{tpu_custom_call.1} parent=1 // loop_header
      %s15 = sphi 0, %s19
      %p16 = scmp.ge.s32.totalorder %s15, 4
      %s25 = sphi 0, %s27
      %s28 = sphi 0, %s25
      %s29 = sphi 0, %s28
      %s45 = sphi 0, %s29
      %s49 = sphi 0, %s49
      %s51 = sphi 0, %s49
      %s52 = sphi 0, %s51
      %s66 = sphi 0, %s52
      %s70 = sphi 0, %s70
      %s72 = sphi 0, %s70
      %s73 = sphi 0, %s72
      %s87 = sphi 0, %s73
      %s93 = sphi 0, %s95
      %s96 = sphi 0, %s93
      %s97 = sphi 0, %s96
      %s113 = sphi 0, %s97
    $region4: #{tpu_custom_call.1} parent=1 // loop_header_branch
      %18 = sbr.rel (%p16) target = $region8
    $region5: #{tpu_custom_call.1} parent=1 // loop_body
      %s20 = ssub.s32 %s15, 1
      %s21 = ssub.s32 %s15, 2
      %s22 = sadd.s32 %s15, 1
      %s23 = ssub.s32 %s15, %s22
      %p24 = scmp.eq.s32.totalorder %s23, 0
      %s26 = sadd.s32 %s25, 1
      %s27 = scalar_select %p24, %s25, %s26
      %p30 = pneg %p24
      %p31 = scmp.eq.s32.totalorder %s15, 1
      %p32 = por %p30, %p31
      %p33 = scmp.ne.s32.totalorder %s25, %s28
      %p34 = scmp.eq.s32.totalorder %s15, 0
      %p35 = por %p33, %p34
      %p36 = scmp.ne.s32.totalorder %s25, %s28
      %p37 = scmp.eq.s32.totalorder %s20, 1
      %p38 = por %p36, %p37
      %p39 = scmp.ne.s32.totalorder %s28, %s29
      %p40 = scmp.eq.s32.totalorder %s20, 0
      %p41 = por %p39, %p40
      %p42 = scmp.ne.s32.totalorder %s28, %s29
      %p43 = scmp.eq.s32.totalorder %s21, 1
      %p44 = por %p42, %p43
      %p46 = scmp.ne.s32.totalorder %s29, %s45
      %p47 = scmp.eq.s32.totalorder %s21, 0
      %p48 = por %p46, %p47
      %s50 = sadd.s32 %s49, 1
      %p53 = scmp.eq.s32.totalorder %s15, 1
      %p54 = scmp.ne.s32.totalorder %s49, %s51
      %p55 = scmp.eq.s32.totalorder %s15, 0
      %p56 = por %p54, %p55
      %p57 = scmp.ne.s32.totalorder %s49, %s51
      %p58 = scmp.eq.s32.totalorder %s20, 1
      %p59 = por %p57, %p58
      %p60 = scmp.ne.s32.totalorder %s51, %s52
      %p61 = scmp.eq.s32.totalorder %s20, 0
      %p62 = por %p60, %p61
      %p63 = scmp.ne.s32.totalorder %s51, %s52
      %p64 = scmp.eq.s32.totalorder %s21, 1
      %p65 = por %p63, %p64
      %p67 = scmp.ne.s32.totalorder %s52, %s66
      %p68 = scmp.eq.s32.totalorder %s21, 0
      %p69 = por %p67, %p68
      %s71 = sadd.s32 %s70, 1
      %p74 = scmp.eq.s32.totalorder %s15, 1
      %p75 = scmp.ne.s32.totalorder %s70, %s72
      %p76 = scmp.eq.s32.totalorder %s15, 0
      %p77 = por %p75, %p76
      %p78 = scmp.ne.s32.totalorder %s70, %s72
      %p79 = scmp.eq.s32.totalorder %s20, 1
      %p80 = por %p78, %p79
      %p81 = scmp.ne.s32.totalorder %s72, %s73
      %p82 = scmp.eq.s32.totalorder %s20, 0
      %p83 = por %p81, %p82
      %p84 = scmp.ne.s32.totalorder %s72, %s73
      %p85 = scmp.eq.s32.totalorder %s21, 1
      %p86 = por %p84, %p85
      %p88 = scmp.ne.s32.totalorder %s73, %s87
      %p89 = scmp.eq.s32.totalorder %s21, 0
      %p90 = por %p88, %p89
      %s91 = ssub.s32 %s15, %s22
      %p92 = scmp.eq.s32.totalorder %s91, 0
      %s94 = sadd.s32 %s93, 1
      %s95 = scalar_select %p92, %s93, %s94
      %p98 = pneg %p92
      %p99 = scmp.eq.s32.totalorder %s15, 1
      %p100 = por %p98, %p99
      %p101 = scmp.ne.s32.totalorder %s93, %s96
      %p102 = scmp.eq.s32.totalorder %s15, 0
      %p103 = por %p101, %p102
      %p104 = scmp.ne.s32.totalorder %s93, %s96
      %p105 = scmp.eq.s32.totalorder %s20, 1
      %p106 = por %p104, %p105
      %p107 = scmp.ne.s32.totalorder %s96, %s97
      %p108 = scmp.eq.s32.totalorder %s20, 0
      %p109 = por %p107, %p108
      %p110 = scmp.ne.s32.totalorder %s96, %s97
      %p111 = scmp.eq.s32.totalorder %s21, 1
      %p112 = por %p110, %p111
      %p114 = scmp.ne.s32.totalorder %s97, %s113
      %p115 = scmp.eq.s32.totalorder %s21, 0
      %p116 = por %p114, %p115
      %p117 = scmp.le.s32.totalorder 1, %s15
      %p118 = scmp.lt.s32.totalorder %s15, 3
      %p119 = pnand %p117, %p118
      %p120 = pneg %p119
      // Predicated region
      $region9: #{tpu_custom_call.1} parent=5 // pred_check
        _
      $region10: #{tpu_custom_call.1} parent=5 // pred_check_branch
        %122 = sbr.rel (%p119) target = $region12
      $region11: #{tpu_custom_call.1} parent=5 // pred_region
        %s123 = ssub.s32 %s15, 1
        // Predicated region
        $region13: #{tpu_custom_call.1} parent=11 // pred_check
          %p124 = pneg %p62
        $region14: #{tpu_custom_call.1} parent=11 // pred_check_branch
          %126 = sbr.rel (%p124) target = $region16
        $region15: #{tpu_custom_call.1} parent=11 // pred_region
          _
        $region16: #{tpu_custom_call.1} parent=11 // pred_fallthru
          _
        // Predicated region
        $region17: #{tpu_custom_call.1} parent=11 // pred_check
          %p127 = pneg %p83
        $region18: #{tpu_custom_call.1} parent=11 // pred_check_branch
          %129 = sbr.rel (%p127) target = $region20
        $region19: #{tpu_custom_call.1} parent=11 // pred_region
          _
        $region20: #{tpu_custom_call.1} parent=11 // pred_fallthru
          _
      $region12: #{tpu_custom_call.1} parent=5 // pred_fallthru
        _
      %p130 = scmp.lt.s32.totalorder %s15, 2
      // Predicated region
      $region21: #{tpu_custom_call.1} parent=5 // pred_check
        %p131 = pneg %p130
      $region22: #{tpu_custom_call.1} parent=5 // pred_check_branch
        %133 = sbr.rel (%p131) target = $region24
      $region23: #{tpu_custom_call.1} parent=5 // pred_region
        // Predicated region
        $region25: #{tpu_custom_call.1} parent=23 // pred_check
          %p134 = pneg %p35
        $region26: #{tpu_custom_call.1} parent=23 // pred_check_branch
          %136 = sbr.rel (%p134) target = $region28
        $region27: #{tpu_custom_call.1} parent=23 // pred_region
          %s137 = sand.u32 %s25, 1
          %s138 = scalar_lea.sflag [#allocation3], %s137
          %s139 = sand.u32 %s25, 1
          %s140 = smul.addr %s139, 64
          %s141 = scalar_lea.vmem [#allocation2], %s140
          %s142 = smul.u32 8, %s15
          %s144 = ssub.s32 1024, 1024
          %145 = vsyncadd %s138, %s144
          %s146 = smul.addr %s142, 128
          %s147 = scalar_lea.hbm %s0, %s146
          %s148 = sshll.u32 %s141, 4
          %s149 = int_to_ptr.vmem [resolvable:$true] %s148
          %154 = dma.hbm_to_vmem [thread:$0]  %s147, 1024, %s149, %s138, 128, 128, 8
        $region28: #{tpu_custom_call.1} parent=23 // pred_fallthru
          _
      $region24: #{tpu_custom_call.1} parent=5 // pred_fallthru
        _
      %p155 = scmp.le.s32.totalorder 1, %s15
      %p156 = scmp.lt.s32.totalorder %s15, 3
      %p157 = pnand %p155, %p156
      %p158 = pneg %p157
      // Predicated region
      $region29: #{tpu_custom_call.1} parent=5 // pred_check
        _
      $region30: #{tpu_custom_call.1} parent=5 // pred_check_branch
        %160 = sbr.rel (%p157) target = $region32
      $region31: #{tpu_custom_call.1} parent=5 // pred_region
        %s161 = ssub.s32 %s15, 1
        %s162 = sand.u32 %s28, 1
        %s163 = scalar_lea.sflag [#allocation3], %s162
        %s164 = sand.u32 %s28, 1
        %s165 = smul.addr %s164, 64
        %s166 = scalar_lea.vmem [#allocation2], %s165
        // Predicated region
        $region33: #{tpu_custom_call.1} parent=31 // pred_check
          %p167 = pneg %p41
        $region34: #{tpu_custom_call.1} parent=31 // pred_check_branch
          %169 = sbr.rel (%p167) target = $region36
        $region35: #{tpu_custom_call.1} parent=31 // pred_region
          %170 = dma.done %s163, 1024
        $region36: #{tpu_custom_call.1} parent=31 // pred_fallthru
          _
        %s171 = sand.u32 %s28, 1
        %s172 = scalar_lea.sflag [#allocation3], %s171
        %s173 = sand.u32 %s28, 1
        %s174 = smul.addr %s173, 64
        %s175 = scalar_lea.vmem [#allocation2], %s174
        %p176 = pneg %p41
        %p177 = pneg %p38
        %p178 = pneg %p62
        %p179 = pneg %p59
        %p180 = pneg %p83
        %p181 = pneg %p80
        %p182 = pneg %p109
        %p183 = pneg %p106
        %s184 = sand.u32 %s96, 1
        %s185 = scalar_lea.sflag [#allocation4], %s184
        %s186 = sand.u32 %s96, 1
        %s187 = smul.addr %s186, 64
        %s188 = scalar_lea.vmem [#allocation5], %s187
        %s189 = smul.u32 8, %s20
        %s190 = smul.u32 8, %s20
        %v191 = vld [vmem:[%s166] sm:$0xff]
        %v192 = vld [vmem:[%s166 + $0x8] sm:$0xff]
        %v193 = vld [vmem:[%s166 + $0x10] sm:$0xff]
        %v194 = vld [vmem:[%s166 + $0x18] sm:$0xff]
        %v195 = vld [vmem:[%s166 + $0x20] sm:$0xff]
        %v196 = vld [vmem:[%s166 + $0x28] sm:$0xff]
        %v197 = vld [vmem:[%s166 + $0x30] sm:$0xff]
        %v198 = vld [vmem:[%s166 + $0x38] sm:$0xff]
        %v199 = vld [vmem:[%s1] sm:$0x1]
        %v201 = vlaneseq
        %v202 = vshrl.u32 %v201, 7
        %v203 = vsub.s32 0, %v202
        %v204 = vrot.slane %v199, %v203
        %v206 = vmul.f32 %v191, %v204
        %v207 = vmul.f32 %v192, %v204
        %v208 = vmul.f32 %v193, %v204
        %v209 = vmul.f32 %v194, %v204
        %v210 = vmul.f32 %v195, %v204
        %v211 = vmul.f32 %v196, %v204
        %v212 = vmul.f32 %v197, %v204
        %v213 = vmul.f32 %v198, %v204
        %v214 = vld [vmem:[%s2] sm:$0x1]
        %v216 = vlaneseq
        %v217 = vshrl.u32 %v216, 7
        %v218 = vsub.s32 0, %v217
        %v219 = vrot.slane %v214, %v218
        %v221 = vadd.f32 %v206, %v219
        %v222 = vadd.f32 %v207, %v219
        %v223 = vadd.f32 %v208, %v219
        %v224 = vadd.f32 %v209, %v219
        %v225 = vadd.f32 %v210, %v219
        %v226 = vadd.f32 %v211, %v219
        %v227 = vadd.f32 %v212, %v219
        %v228 = vadd.f32 %v213, %v219
        %229 = vst [vmem:[%s188] sm:$0xff] %v221
        %230 = vst [vmem:[%s188 + $0x8] sm:$0xff] %v222
        %231 = vst [vmem:[%s188 + $0x10] sm:$0xff] %v223
        %232 = vst [vmem:[%s188 + $0x18] sm:$0xff] %v224
        %233 = vst [vmem:[%s188 + $0x20] sm:$0xff] %v225
        %234 = vst [vmem:[%s188 + $0x28] sm:$0xff] %v226
        %235 = vst [vmem:[%s188 + $0x30] sm:$0xff] %v227
        %236 = vst [vmem:[%s188 + $0x38] sm:$0xff] %v228
        %s237 = sand.u32 %s96, 1
        %s238 = scalar_lea.sflag [#allocation4], %s237
        %s239 = sand.u32 %s96, 1
        %s240 = smul.addr %s239, 64
        %s241 = scalar_lea.vmem [#allocation5], %s240
        // Predicated region
        $region37: #{tpu_custom_call.1} parent=31 // pred_check
          %p242 = pneg %p106
        $region38: #{tpu_custom_call.1} parent=31 // pred_check_branch
          %244 = sbr.rel (%p242) target = $region40
        $region39: #{tpu_custom_call.1} parent=31 // pred_region
          %s245 = smul.u32 8, %s20
          %s247 = ssub.s32 1024, 1024
          %248 = vsyncadd %s238, %s247
          %s249 = smul.addr %s245, 128
          %s250 = scalar_lea.hbm %s3, %s249
          %s251 = sshll.u32 %s241, 4
          %s252 = int_to_ptr.vmem [resolvable:$true] %s251
          %257 = dma.vmem_to_hbm [thread:$0]  %s252, 1024, %s250, %s238, 128, 128, 8
        $region40: #{tpu_custom_call.1} parent=31 // pred_fallthru
          _
      $region32: #{tpu_custom_call.1} parent=5 // pred_fallthru
        _
      %p258 = scmp.le.s32.totalorder 2, %s15
      // Predicated region
      $region41: #{tpu_custom_call.1} parent=5 // pred_check
        %p259 = pneg %p258
      $region42: #{tpu_custom_call.1} parent=5 // pred_check_branch
        %261 = sbr.rel (%p259) target = $region44
      $region43: #{tpu_custom_call.1} parent=5 // pred_region
        %s262 = ssub.s32 %s15, 2
        // Predicated region
        $region45: #{tpu_custom_call.1} parent=43 // pred_check
          %p263 = pneg %p112
        $region46: #{tpu_custom_call.1} parent=43 // pred_check_branch
          %265 = sbr.rel (%p263) target = $region48
        $region47: #{tpu_custom_call.1} parent=43 // pred_region
          %s266 = sand.u32 %s97, 1
          %s267 = scalar_lea.sflag [#allocation4], %s266
          %s268 = sand.u32 %s97, 1
          %s269 = smul.addr %s268, 64
          %s270 = scalar_lea.vmem [#allocation5], %s269
          %271 = dma.done %s267, 1024
        $region48: #{tpu_custom_call.1} parent=43 // pred_fallthru
          _
      $region44: #{tpu_custom_call.1} parent=5 // pred_fallthru
        _
    $region6: #{tpu_custom_call.1} parent=1 // loop_footer
      %s19 = sadd.s32 1, %s15
    $region7: #{tpu_custom_call.1} parent=1 // loop_footer_branch
      %14 = sbr.rel target = $region3
    $region8: #{tpu_custom_call.1} parent=1 // loop_exit
      _
    %272 = vsyncpa [#allocation3], 1
    %s273 = scalar_lea.sflag [#allocation3], 1
    %274 = vsyncpa %s273, 1
    %275 = vsyncpa [#allocation4], 1
    %s276 = scalar_lea.sflag [#allocation4], 1
    %277 = vsyncpa %s276, 1

</llo_original>
